<compile_context>
chip_gen: v7x
topology: tpu7x:2x2x1
jax: 0.10.0
libtpu: 0.0.40
codegen_flags: <defaults>
</compile_context>

<pallas_src>
import functools

import jax
import jax.numpy as jnp
from jax.experimental import pallas as pl
from jax.experimental.pallas import tpu as pltpu


# ---------------------------------------------------------------------------
# Kernels
# ---------------------------------------------------------------------------

def _scale_rows_kernel(x_ref, o_ref):
    """Single-pass path: each block holds the full feature row for tile_n samples."""
    x = x_ref[...]
    # Row min/max in the native dtype (exact for float dtypes); only the tiny
    # (tile_n, 1) stats are promoted to f32.
    x_min = jnp.min(x, axis=1, keepdims=True).astype(jnp.float32)
    x_max = jnp.max(x, axis=1, keepdims=True).astype(jnp.float32)
    scale = 2.0 * pl.reciprocal(x_max - x_min)          # per-row, tile_n reciprocals
    # Subtract-then-scale (not x*scale + bias) to avoid catastrophic
    # cancellation when |min| >> (max - min).
    y = (x.astype(jnp.float32) - x_min) * scale - 1.0
    o_ref[...] = y.astype(o_ref.dtype)


def _row_minmax_kernel(feat, x_ref, min_ref, max_ref):
    """Fallback pass 1: running per-row min/max over feature tiles."""
    j = pl.program_id(1)
    tile_f = x_ref.shape[1]
    x = x_ref[...].astype(jnp.float32)
    # Mask the ragged feature tail (out-of-bounds block columns hold
    # unspecified data) so it cannot contaminate the row min/max.
    col = jax.lax.broadcasted_iota(jnp.int32, x.shape, 1) + j * tile_f
    valid = col < feat
    blk_min = jnp.min(jnp.where(valid, x, jnp.inf), axis=1, keepdims=True)
    blk_max = jnp.max(jnp.where(valid, x, -jnp.inf), axis=1, keepdims=True)

    @pl.when(j == 0)
    def _():
        min_ref[...] = blk_min
        max_ref[...] = blk_max

    @pl.when(j > 0)
    def _():
        min_ref[...] = jnp.minimum(min_ref[...], blk_min)
        max_ref[...] = jnp.maximum(max_ref[...], blk_max)


def _scale_with_stats_kernel(x_ref, min_ref, max_ref, o_ref):
    """Fallback pass 2: elementwise scale with precomputed per-row stats."""
    x_min = min_ref[...]
    scale = 2.0 * pl.reciprocal(max_ref[...] - x_min)
    y = (x_ref[...].astype(jnp.float32) - x_min) * scale - 1.0
    o_ref[...] = y.astype(o_ref.dtype)


# ---------------------------------------------------------------------------
# Tiling / budget helpers
# ---------------------------------------------------------------------------

def _sublane_multiple(dtype):
    """Native row packing: 8 rows for 4-byte, 16 for 2-byte, 32 for 1-byte dtypes."""
    itemsize = max(1, jnp.dtype(dtype).itemsize)
    return 8 * max(1, 4 // itemsize)


def _vmem_budget():
    """(per_buffer_bytes, vmem_limit_bytes, big_vmem), generation-aware."""
    per_buf, limit, big = 4 << 20, 32 << 20, False      # v7x-safe defaults (64 MiB VMEM)
    try:
        vmem = getattr(pltpu.get_tpu_info(), "vmem_capacity_bytes", None)
        if vmem is not None and vmem >= (100 << 20):    # v5e / v6e: 128 MiB VMEM
            per_buf, limit, big = 8 << 20, 64 << 20, True
    except Exception:
        pass
    return per_buf, limit, big


def _choose_tile_n(n, feat, dtype, per_buffer_bytes, min_steps=4):
    """Rows per block for the single-pass path, or None -> two-pass fallback.

    Each row is charged at f32 width so the in-kernel upcast temporary of a
    bf16 input fits under the same budget.
    """
    sub = _sublane_multiple(dtype)
    bytes_per_row = max(1, feat) * max(4, jnp.dtype(dtype).itemsize)
    rows_fit = per_buffer_bytes // bytes_per_row
    if rows_fit < min(n, sub):
        return None                                    # smallest legal block is too big
    if rows_fit >= n and n <= sub:
        return n                                       # tiny batch: one full-batch block
    # Aim for a multi-step grid (double-buffering + megacore), capped by VMEM.
    target = (n + min_steps - 1) // min_steps
    target = max(sub, ((target + sub - 1) // sub) * sub)
    tile = min(rows_fit, target, n)
    if tile >= n:
        return n
    return max(sub, (tile // sub) * sub)


def _choose_fallback_tiles(n, feat, dtype, per_buffer_bytes):
    sub = _sublane_multiple(dtype)
    tile_n = n if n <= sub else sub
    cols = per_buffer_bytes // (tile_n * 4)            # f32-width budget
    tile_f = min(feat, max(128, (cols // 128) * 128))
    return tile_n, tile_f


# ---------------------------------------------------------------------------
# Wrapper
# ---------------------------------------------------------------------------

def scale_to_m1p1(x, *, _debug_per_buffer_bytes=None):
    """x: (N, ...) array. Per-sample rescale to [-1, 1]; same shape/dtype out."""
    n = x.shape[0]
    feat = 1
    for d in x.shape[1:]:
        feat *= d
    x2d = x.reshape(n, feat)

    per_buf, vmem_limit, big_vmem = _vmem_budget()
    if _debug_per_buffer_bytes is not None:
        per_buf = _debug_per_buffer_bytes

    tile_n = _choose_tile_n(n, feat, x2d.dtype, per_buf)

    if tile_n is not None:
        # --- Single-pass path: full feature row per block, tile over batch. ---
        grid_steps = pl.cdiv(n, tile_n)
        in_kwargs = {}
        if big_vmem and grid_steps >= 4 and hasattr(pl, "Buffered"):
            # Third input buffer hides per-step DMA jitter; only on the
            # 128-MiB-VMEM generations where there is headroom.
            in_kwargs["pipeline_mode"] = pl.Buffered(3)
        out2d = pl.pallas_call(
            _scale_rows_kernel,
            out_shape=jax.ShapeDtypeStruct((n, feat), x.dtype),
            grid=(grid_steps,),
            in_specs=[pl.BlockSpec((tile_n, feat), lambda i: (i, 0), **in_kwargs)],
            out_specs=pl.BlockSpec((tile_n, feat), lambda i: (i, 0)),
            compiler_params=pltpu.CompilerParams(
                dimension_semantics=("parallel",),
                vmem_limit_bytes=vmem_limit,
            ),
        )(x2d)
        return out2d.reshape(x.shape)

    # --- Two-pass feature-tiled fallback: small N, huge F (VMEM-safe). ---
    tile_n, tile_f = _choose_fallback_tiles(n, feat, x2d.dtype, per_buf)
    grid = (pl.cdiv(n, tile_n), pl.cdiv(feat, tile_f))

    x_min, x_max = pl.pallas_call(
        functools.partial(_row_minmax_kernel, feat),
        out_shape=(jax.ShapeDtypeStruct((n, 1), jnp.float32),
                   jax.ShapeDtypeStruct((n, 1), jnp.float32)),
        grid=grid,
        in_specs=[pl.BlockSpec((tile_n, tile_f), lambda i, j: (i, j))],
        out_specs=(pl.BlockSpec((tile_n, 1), lambda i, j: (i, 0)),
                   pl.BlockSpec((tile_n, 1), lambda i, j: (i, 0))),
        compiler_params=pltpu.CompilerParams(
            dimension_semantics=("parallel", "arbitrary"),
            vmem_limit_bytes=vmem_limit,
        ),
    )(x2d)

    out2d = pl.pallas_call(
        _scale_with_stats_kernel,
        out_shape=jax.ShapeDtypeStruct((n, feat), x.dtype),
        grid=grid,
        in_specs=[pl.BlockSpec((tile_n, tile_f), lambda i, j: (i, j)),
                  pl.BlockSpec((tile_n, 1), lambda i, j: (i, 0)),
                  pl.BlockSpec((tile_n, 1), lambda i, j: (i, 0))],
        out_specs=pl.BlockSpec((tile_n, tile_f), lambda i, j: (i, j)),
        compiler_params=pltpu.CompilerParams(
            dimension_semantics=("parallel", "parallel"),
            vmem_limit_bytes=vmem_limit,
        ),
    )(x2d, x_min, x_max)
    return out2d.reshape(x.shape)


def _reference(x):
    # Pure-JAX reference mirroring the PyTorch module.
    n = x.shape[0]
    flat = x.reshape(n, -1)
    x_min = flat.min(axis=1).reshape((n,) + (1,) * (x.ndim - 1))
    x_max = flat.max(axis=1).reshape((n,) + (1,) * (x.ndim - 1))
    return 2 * (x - x_min) / (x_max - x_min) - 1


if __name__ == "__main__":
    key = jax.random.PRNGKey(0)
    k1, k2, k3 = jax.random.split(key, 3)

    # Primary test: typical NCHW image input.
    x = jax.random.normal(key, (2, 4, 16, 16), dtype=jnp.float32)
    out = jax.block_until_ready(scale_to_m1p1(x))
    ref = _reference(x)
    assert out.shape == x.shape and out.dtype == x.dtype
    assert jnp.allclose(out, ref, atol=1e-5, rtol=1e-5), "mismatch vs reference"
    flat = out.reshape(out.shape[0], -1)
    assert jnp.allclose(flat.min(axis=1), -1.0, atol=1e-5)
    assert jnp.allclose(flat.max(axis=1), 1.0, atol=1e-5)

    # Ragged feature dim (F % 128 != 0) and large offset: exercises the
    # no-pad full-row block and the subtract-then-scale numerics.
    x_ragged = jax.random.normal(k1, (2, 3, 5, 5), dtype=jnp.float32) * 3.0 + 100.0
    out_r = jax.block_until_ready(scale_to_m1p1(x_ragged))
    assert jnp.allclose(out_r, _reference(x_ragged), atol=1e-5, rtol=1e-5)

    # Larger batch: multi-step grid (double-buffering / megacore path).
    x_big = jax.random.normal(k2, (32, 4, 16, 16), dtype=jnp.float32)
    out_b = jax.block_until_ready(scale_to_m1p1(x_big))
    assert jnp.allclose(out_b, _reference(x_big), atol=1e-5, rtol=1e-5)

    # Two-pass feature-tiled fallback (forced via a tiny per-buffer budget).
    x_fb = jax.random.normal(k3, (4, 3, 10, 10), dtype=jnp.float32)
    out_fb = jax.block_until_ready(scale_to_m1p1(x_fb, _debug_per_buffer_bytes=4096))
    assert jnp.allclose(out_fb, _reference(x_fb), atol=1e-5, rtol=1e-5)

    print("KERNEL_OK")
</pallas_src>

<mosaic_0001>
module attributes {stable_mosaic.version = 11 : i64} {
  func.func @_scale_rows_kernel(%arg0: i32, %arg1: memref<2x1024xf32, #tpu.memory_space<vmem>>, %arg2: memref<2x1024xf32, #tpu.memory_space<vmem>>) attributes {dimension_semantics = [#tpu.dimension_semantics<parallel>], iteration_bounds = array<i64: 1>, scalar_prefetch = 0 : i64, scratch_operands = 0 : i64, tpu.core_type = #tpu.core_type<tc>, window_params = [{transform_indices = @transform_0, window_bounds = array<i64: 2, 1024>}, {transform_indices = @transform_1, window_bounds = array<i64: 2, 1024>}]} {
    %c0 = arith.constant 0 : index
    %c0_0 = arith.constant 0 : index
    %0 = vector.load %arg1[%c0, %c0_0] : memref<2x1024xf32, #tpu.memory_space<vmem>>, vector<2x1024xf32>
    %cst = arith.constant dense<0x7F800000> : vector<2xf32>
    %1 = vector.multi_reduction <minimumf>, %0, %cst [1] : vector<2x1024xf32> to vector<2xf32>
    %2 = vector.shape_cast %1 : vector<2xf32> to vector<2x1xf32>
    %cst_1 = arith.constant dense<0xFF800000> : vector<2xf32>
    %3 = vector.multi_reduction <maximumf>, %0, %cst_1 [1] : vector<2x1024xf32> to vector<2xf32>
    %4 = vector.shape_cast %3 : vector<2xf32> to vector<2x1xf32>
    %5 = arith.subf %4, %2 : vector<2x1xf32>
    %6 = tpu.reciprocal %5 : vector<2x1xf32> -> vector<2x1xf32>
    %cst_2 = arith.constant 2.000000e+00 : f32
    %7 = vector.broadcast %cst_2 : f32 to vector<2x1xf32>
    %8 = arith.mulf %7, %6 : vector<2x1xf32>
    %9 = vector.broadcast %2 : vector<2x1xf32> to vector<2x1024xf32>
    %10 = arith.subf %0, %9 : vector<2x1024xf32>
    %11 = vector.broadcast %8 : vector<2x1xf32> to vector<2x1024xf32>
    %12 = arith.mulf %10, %11 : vector<2x1024xf32>
    %cst_3 = arith.constant 1.000000e+00 : f32
    %13 = vector.broadcast %cst_3 : f32 to vector<2x1024xf32>
    %14 = arith.subf %12, %13 : vector<2x1024xf32>
    %c0_4 = arith.constant 0 : index
    %c0_5 = arith.constant 0 : index
    %15 = vector.load %arg2[%c0_4, %c0_5] : memref<2x1024xf32, #tpu.memory_space<vmem>>, vector<2x1024xf32>
    tpu.vector_store %arg2[%c0_4, %c0_5], %14 {strides = array<i32>} : memref<2x1024xf32, #tpu.memory_space<vmem>>, vector<2x1024xf32>,
    return
  }
  func.func @transform_0(%arg0: i32) -> (i32, i32) {
    %c0_i32 = arith.constant 0 : i32
    %c0_i32_0 = arith.constant 0 : i32
    return %arg0, %c0_i32 : i32, i32
  }
  func.func @transform_1(%arg0: i32) -> (i32, i32) {
    %c0_i32 = arith.constant 0 : i32
    %c0_i32_0 = arith.constant 0 : i32
    return %arg0, %c0_i32 : i32, i32
  }
}

</mosaic_0001>

<llo_original>
// kernel: tpu_custom_call.1
$region0: #{tpu_custom_call.1}
  #allocation0 [shape = 'u32[]', space=smem, size = 0x4, offset = 0x4, fixed_abs, tag = 'smem constant byte address 0x4 - core index']
  #allocation1 [shape = 'u32[144,128]{1,0:T(1,128)}', space=vmem, size = 0x12000, scoped, tag = 'internal scratch']
  %s0 = inlined_call_operand.hbm [shape: f32[2,1024], index: 0, kind: input, shape index: {}]
  %s1 = inlined_call_operand.hbm [shape: f32[2,1024], index: 1, kind: output, shape index: {}]
  %s2 = sld [smem:[#allocation0]]
  $region18: #{tpu_custom_call.1} parent=0
    _
  %s4 = ssub.s32 1, %s2
  %s5 = scalar_select 0, %s4, %s2
  $region1: #{tpu_custom_call.1} parent=0
    #allocation2 [shape = 'u8[8192]{0}', space=vmem, size = 0x2000, scoped, tag = 'input window, operand 0, single buffered']
    #allocation3 [shape = 's32[1]{0}', space=sflag, size = 0x4, scoped, tag = 'scoped memory for tpu_custom_call.1']
    #allocation4 [shape = 's32[1]{0}', space=sflag, size = 0x4, scoped, tag = 'scoped memory for tpu_custom_call.1']
    #allocation5 [shape = 'u8[8192]{0}', space=vmem, size = 0x2000, scoped, tag = 'output window, operand 0, single buffered']
    %6 = vsyncpa [#allocation3], 0
    %7 = vsyncpa [#allocation4], 0
    // Predicated region
    $region2: #{tpu_custom_call.1} parent=1 // pred_check
      _
    $region3: #{tpu_custom_call.1} parent=1 // pred_check_branch
      %9 = sbr.rel (0) target = $region5
    $region4: #{tpu_custom_call.1} parent=1 // pred_region
      %s11 = ssub.s32 256, 256
      %12 = vsyncadd [#allocation3], %s11
      %s14 = sshll.u32 [#allocation2], 4
      %s15 = int_to_ptr.vmem [resolvable:$true] %s14
      %17 = dma.hbm_to_vmem [thread:$0]  %s0, 256, %s15, [#allocation3]
    $region5: #{tpu_custom_call.1} parent=1 // pred_fallthru
      _
    // Predicated region
    $region6: #{tpu_custom_call.1} parent=1 // pred_check
      _
    $region7: #{tpu_custom_call.1} parent=1 // pred_check_branch
      %19 = sbr.rel (0) target = $region9
    $region8: #{tpu_custom_call.1} parent=1 // pred_region
      %20 = dma.done [#allocation3], 256
    $region9: #{tpu_custom_call.1} parent=1 // pred_fallthru
      _
    %v21 = vld [vmem:[#allocation2] sm:$0xff]
    %v22 = vld [vmem:[#allocation2 + $0x8] sm:$0xff]
    %v25 = vcombine.high %v21, %v21
    %v27 = vunpack.c.l.s4 1983009808
    %v28 = vunpack.c.0.s8 %v27
    %v29 = vlaneseq
    %v30 = vshrl.u32 %v29, 7
    %v31 = vsub.s32 %v28, %v30
    %v32 = vrot.slane %v21, %v31
    %v34 = vunpack.c.l.s4 1983009808
    %v35 = vunpack.c.0.s8 %v34
    %v36 = vlaneseq
    %v37 = vshrl.u32 %v36, 7
    %v38 = vsub.s32 %v35, %v37
    %v39 = vrot.slane %v25, %v38
    %v40 = vcombine.high %v32, %v32
    %v41 = vcombine.high %v39, %v39
    %v42 = vcombine.high %v22, %v22
    %v44 = vunpack.c.l.s4 1983009808
    %v45 = vunpack.c.0.s8 %v44
    %v46 = vlaneseq
    %v47 = vshrl.u32 %v46, 7
    %v48 = vsub.s32 %v45, %v47
    %v49 = vrot.slane %v22, %v48
    %v51 = vunpack.c.l.s4 1983009808
    %v52 = vunpack.c.0.s8 %v51
    %v53 = vlaneseq
    %v54 = vshrl.u32 %v53, 7
    %v55 = vsub.s32 %v52, %v54
    %v56 = vrot.slane %v42, %v55
    %v57 = vcombine.high %v49, %v49
    %v58 = vcombine.high %v56, %v56
    %vm67 = vcmask 1041408
    %v68 = vsel %vm67, %v32, inf
    %v69 = vsel %vm67, %v40, inf
    %v70 = vsel %vm67, %v39, inf
    %v71 = vsel %vm67, %v41, inf
    %v72 = vsel %vm67, %v49, inf
    %v73 = vmin.f32 %v68, %v72
    %v74 = vsel %vm67, %v57, inf
    %v75 = vmin.f32 %v69, %v74
    %v76 = vsel %vm67, %v56, inf
    %v77 = vmin.f32 %v70, %v76
    %v78 = vsel %vm67, %v58, inf
    %v79 = vmin.f32 %v71, %v78
    %v80 = vmin.f32 %v73, %v75
    %v81 = vmin.f32 %v77, %v79
    %v82 = vmin.f32 %v80, %v81
    %83 = vmin.xlane.f32.xlu0 %v82
    %v84 = vpop.xlane.xlu0 %83
    %v85 = vsel %vm67, %v32, -inf
    %v86 = vsel %vm67, %v40, -inf
    %v87 = vsel %vm67, %v39, -inf
    %v88 = vsel %vm67, %v41, -inf
    %v89 = vsel %vm67, %v49, -inf
    %v90 = vmax.f32 %v85, %v89
    %v91 = vsel %vm67, %v57, -inf
    %v92 = vmax.f32 %v86, %v91
    %v93 = vsel %vm67, %v56, -inf
    %v94 = vmax.f32 %v87, %v93
    %v95 = vsel %vm67, %v58, -inf
    %v96 = vmax.f32 %v88, %v95
    %v97 = vmax.f32 %v90, %v92
    %v98 = vmax.f32 %v94, %v96
    %v99 = vmax.f32 %v97, %v98
    %100 = vmax.xlane.f32.xlu0 %v99
    %v101 = vpop.xlane.xlu0 %100
    %v102 = vsub.f32 %v101, %v84
    %v103 = vrcp.pop %v102
    %v104 = vmul.f32 %v103, 2.0
    %v107 = vunpack.c.l.s4 269488144
    %v108 = vunpack.c.0.s8 %v107
    %v109 = vlaneseq
    %v110 = vshrl.u32 %v109, 7
    %v111 = vsub.s32 %v108, %v110
    %v112 = vrot.slane %v84, %v111
    %v114 = vsub.f32 %v21, %v112
    %v115 = vsub.f32 %v22, %v112
    %v118 = vunpack.c.l.s4 269488144
    %v119 = vunpack.c.0.s8 %v118
    %v120 = vlaneseq
    %v121 = vshrl.u32 %v120, 7
    %v122 = vsub.s32 %v119, %v121
    %v123 = vrot.slane %v104, %v122
    %v125 = vmul.f32 %v114, %v123
    %v126 = vmul.f32 %v115, %v123
    %v127 = vsub.f32 %v125, 1.0
    %v128 = vsub.f32 %v126, 1.0
    %129 = vst [vmem:[#allocation5] sm:$0xff] %v127
    %130 = vst [vmem:[#allocation5 + $0x8] sm:$0xff] %v128
    // Predicated region
    $region10: #{tpu_custom_call.1} parent=1 // pred_check
      _
    $region11: #{tpu_custom_call.1} parent=1 // pred_check_branch
      %132 = sbr.rel (0) target = $region13
    $region12: #{tpu_custom_call.1} parent=1 // pred_region
      %s134 = ssub.s32 256, 256
      %135 = vsyncadd [#allocation4], %s134
      %s137 = sshll.u32 [#allocation5], 4
      %s138 = int_to_ptr.vmem [resolvable:$true] %s137
      %140 = dma.vmem_to_hbm [thread:$0]  %s138, 256, %s1, [#allocation4]
    $region13: #{tpu_custom_call.1} parent=1 // pred_fallthru
      _
    // Predicated region
    $region14: #{tpu_custom_call.1} parent=1 // pred_check
      _
    $region15: #{tpu_custom_call.1} parent=1 // pred_check_branch
      %142 = sbr.rel (0) target = $region17
    $region16: #{tpu_custom_call.1} parent=1 // pred_region
      %143 = dma.done [#allocation4], 256
    $region17: #{tpu_custom_call.1} parent=1 // pred_fallthru
      _
    %144 = vsyncpa [#allocation3], 1
    %145 = vsyncpa [#allocation4], 1

</llo_original>
